<compile_context>
chip_gen: v6e
topology: v6e:2x2x1
jax: 0.10.0
libtpu: 0.0.40
codegen_flags: <defaults>
</compile_context>

<pallas_src>
import jax
import jax.numpy as jnp
from jax import lax
from jax.experimental import pallas as pl
from jax.experimental.pallas import tpu as pltpu


def _round_up(n, m):
    return ((n + m - 1) // m) * m


def _round_down(n, m):
    return (n // m) * m


def _vmem_capacity_bytes():
    """Physical VMEM of the current chip; conservative fallback (v7x = 64 MiB)."""
    try:
        info = pltpu.get_tpu_info()
        for attr in ("vmem_capacity_bytes", "vmem_size_bytes", "vmem_bytes"):
            v = getattr(info, attr, None)
            if v:
                return int(v)
    except Exception:
        pass
    return 64 << 20


def mlp_kernel(x_ref, w1_ref, b1_ref, w2_ref, b2_ref, o_ref):
    # x_ref : (TB, D)  batch tile (pipelined; f32 or bf16)
    # w1_ref: (D, H)   VMEM-resident (f32 or bf16)
    # b1_ref: (1, H)   VMEM-resident f32
    # w2_ref: (1, H)   VMEM-resident f32 (PyTorch (out, in) layout)
    # b2_ref: (1, 1)   SMEM scalar f32
    # o_ref : (1, TB)  lane-dense output tile (batch on the lane axis)
    h = jnp.dot(x_ref[...], w1_ref[...], preferred_element_type=jnp.float32)  # (TB, H)
    h = jnp.maximum(h + b1_ref[...], 0.0)                                     # bias + ReLU (f32 VPU)
    # Second layer: contract H of (1, H) with H of (TB, H) -> (1, TB).
    # NT matmul on the MXU; result is already lane-dense for a full-width store.
    # (If a vxpose of h ever shows up in the bundle dump, switch to
    #  pl.dot(w2_ref[...], h, trans_b=True).)
    z = lax.dot_general(
        w2_ref[...], h,
        dimension_numbers=(((1,), (1,)), ((), ())),
        preferred_element_type=jnp.float32)                                   # (1, TB)
    o_ref[...] = jax.nn.sigmoid(z + b2_ref[0, 0]).astype(o_ref.dtype)


def nn_ref(x, w1, b1, w2, b2):
    """Plain-JAX reference (same math as the PyTorch module)."""
    h = jnp.maximum(x @ w1 + b1, 0.0)
    return jax.nn.sigmoid(h @ w2.T + b2)


def nn_forward_pallas(x, w1, b1, w2, b2, *, block_b=None, use_bf16=False):
    """x: (B, D) f32 -> (B, 1) f32, matching NN.forward."""
    B, D = x.shape
    H = w1.shape[1]
    orig_B = B

    if use_bf16:
        # Halve HBM traffic on the streamed x and resident w1. Accumulation is
        # f32 (preferred_element_type); bias/ReLU/sigmoid stay f32.  Cast must
        # happen here (before pallas_call) so the DMA actually moves fewer bytes.
        x = x.astype(jnp.bfloat16)
        w1 = w1.astype(jnp.bfloat16)

    x_item = jnp.dtype(x.dtype).itemsize
    w1_item = jnp.dtype(w1.dtype).itemsize
    D_pad = _round_up(D, 128)          # lane padding of the x tile in VMEM
    H_pad = _round_up(H, 128)

    # ---- per-generation VMEM budget (v7x: 64 MiB phys; v5e/v6e: 128 MiB) ----
    vmem_budget = int(_vmem_capacity_bytes() * 3 // 4)
    vmem_budget = max(32 << 20, min(vmem_budget, 100 << 20))

    # Resident weights: conservatively count 2 buffers even though we request
    # single buffering (pl.Buffered(1)) below.
    resident_bytes = 2 * _round_up(D, 8) * H_pad * w1_item          # w1
    resident_bytes += 2 * 2 * 8 * H_pad * 4                         # b1, w2
    # Per batch-row: double-buffered x tile + double-buffered (8, TB) out tile.
    per_row_bytes = 2 * D_pad * x_item + 2 * 8 * 4
    avail = vmem_budget - resident_bytes
    if avail < 128 * per_row_bytes:
        # Huge input_dim: resident w1 alone blows the budget (mainly v7x).
        # TODO(synk): K-tiled D-reduction path instead of this XLA fallback.
        return nn_ref(x.astype(jnp.float32), w1.astype(jnp.float32), b1, w2, b2)

    if block_b is None:
        # ~8 MiB (lane-padded) per x tile, up to 16K rows; amortizes the
        # ~0.35 us per-grid-step overhead on all generations.
        block_b = min((8 << 20) // (D_pad * x_item), 16384)
    block_b = max(128, _round_down(min(block_b, avail // per_row_bytes), 128))

    # ---- grid over the (unpadded) batch; ragged tail = partial edge block ----
    if B < 128:
        # Degenerate tiny batch: pad up to one minimal tile (negligible copy).
        x = jnp.pad(x, ((0, 128 - B), (0, 0)))
        B = 128
    TB = min(block_b, _round_down(B, 128))
    num_tiles = pl.cdiv(B, TB)
    if num_tiles == 1 and TB >= 256:
        # Keep >= 2 grid steps so both v7x TensorCores get work.
        TB = _round_up(TB // 2, 128)
        num_tiles = pl.cdiv(B, TB)
    out_lanes = num_tiles * TB        # lane-padded output width (sliced below)

    cost = pl.CostEstimate(
        flops=2 * B * D * H + 2 * B * H,
        transcendentals=B,                                    # sigmoid
        bytes_accessed=x_item * B * D + w1_item * D * H + 4 * (2 * H + 1 + out_lanes),
    )

    def call(single_buffer_weights):
        wkw = dict(pipeline_mode=pl.Buffered(1)) if single_buffer_weights else {}
        return pl.pallas_call(
            mlp_kernel,
            out_shape=jax.ShapeDtypeStruct((1, out_lanes), jnp.float32),
            grid_spec=pltpu.PrefetchScalarGridSpec(
                num_scalar_prefetch=0,
                grid=(num_tiles,),
                in_specs=[
                    pl.BlockSpec((TB, D), lambda i: (i, 0)),              # x: streamed
                    pl.BlockSpec((D, H), lambda i: (0, 0), **wkw),        # w1: resident
                    pl.BlockSpec((1, H), lambda i: (0, 0), **wkw),        # b1: resident
                    pl.BlockSpec((1, H), lambda i: (0, 0), **wkw),        # w2: resident
                    pl.BlockSpec(memory_space=pltpu.MemorySpace.SMEM),    # b2: SMEM scalar
                ],
                out_specs=pl.BlockSpec((1, TB), lambda i: (0, i)),
            ),
            compiler_params=pltpu.CompilerParams(
                dimension_semantics=("parallel",),
                vmem_limit_bytes=vmem_budget,
            ),
            cost_estimate=cost,
        )(x, w1, b1, w2, b2)

    try:
        out = call(single_buffer_weights=True)
    except Exception:
        # pipeline_mode=Buffered(1) unsupported in this JAX build; default
        # double-buffered weights are still within the VMEM budget.
        out = call(single_buffer_weights=False)

    return out.reshape(out_lanes)[:orig_B].reshape(orig_B, 1)


def nn_forward(x, w1, b1, w2, b2, *, min_pallas_batch=2048, block_b=None, use_bf16=False):
    """Dispatcher: tiny batches are cheaper as a plain fused XLA matmul chain."""
    if x.shape[0] < min_pallas_batch:
        return nn_ref(x, w1, b1, w2, b2)
    return nn_forward_pallas(x, w1, b1, w2, b2, block_b=block_b, use_bf16=use_bf16)


def init_params(key, input_dim):
    """Deterministic init mimicking nn.Linear's uniform(-1/sqrt(fan_in), +) scheme."""
    hidden = input_dim // 2
    k1, k2, k3, k4 = jax.random.split(key, 4)
    bound1 = 1.0 / jnp.sqrt(jnp.float32(input_dim))
    bound2 = 1.0 / jnp.sqrt(jnp.float32(hidden))
    # w1 stored (in, out); w2 stored (out, in) = PyTorch layout (used via NT contraction).
    w1 = jax.random.uniform(k1, (input_dim, hidden), jnp.float32, -bound1, bound1)
    b1 = jax.random.uniform(k2, (1, hidden), jnp.float32, -bound1, bound1)
    w2 = jax.random.uniform(k3, (1, hidden), jnp.float32, -bound2, bound2)
    b2 = jax.random.uniform(k4, (1, 1), jnp.float32, -bound2, bound2)
    return w1, b1, w2, b2


if __name__ == "__main__":
    key = jax.random.PRNGKey(0)
    kx, kp = jax.random.split(key)

    # Small shapes; batch=300 exercises the ragged tail (partial edge block,
    # no jnp.pad) and, with block_b=128, a multi-step grid with resident weights.
    batch, input_dim = 300, 32
    x = jax.random.normal(kx, (batch, input_dim), jnp.float32)
    w1, b1, w2, b2 = init_params(kp, input_dim)

    ref = nn_ref(x, w1, b1, w2, b2)

    # f32 path, explicit small tile (3 x 128-row grid steps).
    out = jax.block_until_ready(nn_forward_pallas(x, w1, b1, w2, b2, block_b=128))
    assert out.shape == (batch, 1)
    assert jnp.allclose(out, ref, atol=1e-5, rtol=1e-5)

    # Auto-tiled path (heuristic block_b, VMEM-budgeted, 2-tile grid here).
    out2 = jax.block_until_ready(nn_forward_pallas(x, w1, b1, w2, b2))
    assert jnp.allclose(out2, ref, atol=1e-5, rtol=1e-5)

    # bf16-streamed path (halved HBM traffic; relaxed tolerance, f32 accumulate).
    out3 = jax.block_until_ready(nn_forward_pallas(x, w1, b1, w2, b2, use_bf16=True))
    assert jnp.allclose(out3, ref, atol=5e-2, rtol=5e-2)

    print("KERNEL_OK")
</pallas_src>

<mosaic_0001>
module attributes {stable_mosaic.version = 11 : i64} {
  func.func @mlp_kernel(%arg0: i32, %arg1: memref<128x32xf32, #tpu.memory_space<vmem>>, %arg2: memref<32x16xf32, #tpu.memory_space<vmem>>, %arg3: memref<1x16xf32, #tpu.memory_space<vmem>>, %arg4: memref<1x16xf32, #tpu.memory_space<vmem>>, %arg5: memref<1x1xf32, #tpu.memory_space<smem>>, %arg6: memref<1x128xf32, #tpu.memory_space<vmem>>) attributes {dimension_semantics = [#tpu.dimension_semantics<parallel>], iteration_bounds = array<i64: 3>, scalar_prefetch = 0 : i64, scratch_operands = 0 : i64, tpu.core_type = #tpu.core_type<tc>, window_params = [{transform_indices = @transform_0, window_bounds = array<i64: 128, 32>}, {pipeline_mode = #tpu.pipeline_mode<synchronous>, transform_indices = @transform_1, window_bounds = array<i64: 32, 16>}, {pipeline_mode = #tpu.pipeline_mode<synchronous>, transform_indices = @transform_2, window_bounds = array<i64: 1, 16>}, {pipeline_mode = #tpu.pipeline_mode<synchronous>, transform_indices = @transform_3, window_bounds = array<i64: 1, 16>}, {transform_indices = @transform_4, window_bounds = array<i64: 1, 1>}, {transform_indices = @transform_5, window_bounds = array<i64: 1, 128>}]} {
    %c0 = arith.constant 0 : index
    %c0_0 = arith.constant 0 : index
    %0 = vector.load %arg1[%c0, %c0_0] : memref<128x32xf32, #tpu.memory_space<vmem>>, vector<128x32xf32>
    %c0_1 = arith.constant 0 : index
    %c0_2 = arith.constant 0 : index
    %1 = vector.load %arg2[%c0_1, %c0_2] : memref<32x16xf32, #tpu.memory_space<vmem>>, vector<32x16xf32>
    %cst = arith.constant dense<0.000000e+00> : vector<128x16xf32>
    %2 = tpu.matmul %0, %1, %cst {dimension_numbers = #tpu.dot_dimension_numbers<[1], [0], [0], [1], [0, 0, 1, 1], [], []>} : vector<128x32xf32>, vector<32x16xf32>, vector<128x16xf32> -> vector<128x16xf32>
    %c0_3 = arith.constant 0 : index
    %c0_4 = arith.constant 0 : index
    %3 = vector.load %arg3[%c0_3, %c0_4] : memref<1x16xf32, #tpu.memory_space<vmem>>, vector<1x16xf32>
    %4 = vector.broadcast %3 : vector<1x16xf32> to vector<128x16xf32>
    %5 = arith.addf %2, %4 : vector<128x16xf32>
    %cst_5 = arith.constant 0.000000e+00 : f32
    %6 = vector.broadcast %cst_5 : f32 to vector<128x16xf32>
    %7 = arith.maximumf %5, %6 : vector<128x16xf32>
    %c0_6 = arith.constant 0 : index
    %c0_7 = arith.constant 0 : index
    %8 = vector.load %arg4[%c0_6, %c0_7] : memref<1x16xf32, #tpu.memory_space<vmem>>, vector<1x16xf32>
    %cst_8 = arith.constant dense<0.000000e+00> : vector<1x128xf32>
    %9 = tpu.matmul %8, %7, %cst_8 {dimension_numbers = #tpu.dot_dimension_numbers<[1], [1], [0], [0], [0, 0, 1, 0], [], []>} : vector<1x16xf32>, vector<128x16xf32>, vector<1x128xf32> -> vector<1x128xf32>
    %c0_9 = arith.constant 0 : index
    %c0_10 = arith.constant 0 : index
    %10 = memref.load %arg5[%c0_9, %c0_10] : memref<1x1xf32, #tpu.memory_space<smem>>
    %11 = vector.broadcast %10 : f32 to vector<1x128xf32>
    %12 = arith.addf %9, %11 : vector<1x128xf32>
    %13 = arith.negf %12 : vector<1x128xf32>
    %14 = math.exp %13 : vector<1x128xf32>
    %cst_11 = arith.constant 1.000000e+00 : f32
    %15 = vector.broadcast %cst_11 : f32 to vector<1x128xf32>
    %16 = arith.addf %15, %14 : vector<1x128xf32>
    %17 = arith.divf %15, %16 : vector<1x128xf32>
    %c0_12 = arith.constant 0 : index
    %c0_13 = arith.constant 0 : index
    %18 = vector.load %arg6[%c0_12, %c0_13] : memref<1x128xf32, #tpu.memory_space<vmem>>, vector<1x128xf32>
    tpu.vector_store %arg6[%c0_12, %c0_13], %17 {strides = array<i32>} : memref<1x128xf32, #tpu.memory_space<vmem>>, vector<1x128xf32>,
    return
  }
  func.func @transform_0(%arg0: i32) -> (i32, i32) {
    %c0_i32 = arith.constant 0 : i32
    %c0_i32_0 = arith.constant 0 : i32
    return %arg0, %c0_i32 : i32, i32
  }
  func.func @transform_1(%arg0: i32) -> (i32, i32) {
    %c0_i32 = arith.constant 0 : i32
    %c0_i32_0 = arith.constant 0 : i32
    %c0_i32_1 = arith.constant 0 : i32
    return %c0_i32, %c0_i32_0 : i32, i32
  }
  func.func @transform_2(%arg0: i32) -> (i32, i32) {
    %c0_i32 = arith.constant 0 : i32
    %c0_i32_0 = arith.constant 0 : i32
    %c0_i32_1 = arith.constant 0 : i32
    return %c0_i32, %c0_i32_0 : i32, i32
  }
  func.func @transform_3(%arg0: i32) -> (i32, i32) {
    %c0_i32 = arith.constant 0 : i32
    %c0_i32_0 = arith.constant 0 : i32
    %c0_i32_1 = arith.constant 0 : i32
    return %c0_i32, %c0_i32_0 : i32, i32
  }
  func.func @transform_4(%arg0: i32) -> (i32, i32) {
    %c0_i32 = arith.constant 0 : i32
    %c0_i32_0 = arith.constant 0 : i32
    %c0_i32_1 = arith.constant 0 : i32
    return %c0_i32, %c0_i32_0 : i32, i32
  }
  func.func @transform_5(%arg0: i32) -> (i32, i32) {
    %c0_i32 = arith.constant 0 : i32
    %c0_i32_0 = arith.constant 0 : i32
    return %c0_i32, %arg0 : i32, i32
  }
}

module attributes {stable_mosaic.version = 11 : i64} {
  func.func @mlp_kernel(%arg0: i32, %arg1: memref<128x32xf32, #tpu.memory_space<vmem>>, %arg2: memref<32x16xf32, #tpu.memory_space<vmem>>, %arg3: memref<1x16xf32, #tpu.memory_space<vmem>>, %arg4: memref<1x16xf32, #tpu.memory_space<vmem>>, %arg5: memref<1x1xf32, #tpu.memory_space<smem>>, %arg6: memref<1x128xf32, #tpu.memory_space<vmem>>) attributes {dimension_semantics = [#tpu.dimension_semantics<parallel>], iteration_bounds = array<i64: 3>, scalar_prefetch = 0 : i64, scratch_operands = 0 : i64, tpu.core_type = #tpu.core_type<tc>, window_params = [{transform_indices = @transform_0, window_bounds = array<i64: 128, 32>}, {pipeline_mode = #tpu.pipeline_mode<synchronous>, transform_indices = @transform_1, window_bounds = array<i64: 32, 16>}, {pipeline_mode = #tpu.pipeline_mode<synchronous>, transform_indices = @transform_2, window_bounds = array<i64: 1, 16>}, {pipeline_mode = #tpu.pipeline_mode<synchronous>, transform_indices = @transform_3, window_bounds = array<i64: 1, 16>}, {transform_indices = @transform_4, window_bounds = array<i64: 1, 1>}, {transform_indices = @transform_5, window_bounds = array<i64: 1, 128>}]} {
    %c0 = arith.constant 0 : index
    %c0_0 = arith.constant 0 : index
    %0 = vector.load %arg1[%c0, %c0_0] : memref<128x32xf32, #tpu.memory_space<vmem>>, vector<128x32xf32>
    %c0_1 = arith.constant 0 : index
    %c0_2 = arith.constant 0 : index
    %1 = vector.load %arg2[%c0_1, %c0_2] : memref<32x16xf32, #tpu.memory_space<vmem>>, vector<32x16xf32>
    %cst = arith.constant dense<0.000000e+00> : vector<128x16xf32>
    %2 = tpu.matmul %0, %1, %cst {dimension_numbers = #tpu.dot_dimension_numbers<[1], [0], [0], [1], [0, 0, 1, 1], [], []>} : vector<128x32xf32>, vector<32x16xf32>, vector<128x16xf32> -> vector<128x16xf32>
    %c0_3 = arith.constant 0 : index
    %c0_4 = arith.constant 0 : index
    %3 = vector.load %arg3[%c0_3, %c0_4] : memref<1x16xf32, #tpu.memory_space<vmem>>, vector<1x16xf32>
    %4 = vector.broadcast %3 : vector<1x16xf32> to vector<128x16xf32>
    %5 = arith.addf %2, %4 : vector<128x16xf32>
    %cst_5 = arith.constant 0.000000e+00 : f32
    %6 = vector.broadcast %cst_5 : f32 to vector<128x16xf32>
    %7 = arith.maximumf %5, %6 : vector<128x16xf32>
    %c0_6 = arith.constant 0 : index
    %c0_7 = arith.constant 0 : index
    %8 = vector.load %arg4[%c0_6, %c0_7] : memref<1x16xf32, #tpu.memory_space<vmem>>, vector<1x16xf32>
    %cst_8 = arith.constant dense<0.000000e+00> : vector<1x128xf32>
    %9 = tpu.matmul %8, %7, %cst_8 {dimension_numbers = #tpu.dot_dimension_numbers<[1], [1], [0], [0], [0, 0, 1, 0], [], []>} : vector<1x16xf32>, vector<128x16xf32>, vector<1x128xf32> -> vector<1x128xf32>
    %c0_9 = arith.constant 0 : index
    %c0_10 = arith.constant 0 : index
    %10 = memref.load %arg5[%c0_9, %c0_10] : memref<1x1xf32, #tpu.memory_space<smem>>
    %11 = vector.broadcast %10 : f32 to vector<1x128xf32>
    %12 = arith.addf %9, %11 : vector<1x128xf32>
    %13 = arith.negf %12 : vector<1x128xf32>
    %14 = math.exp %13 : vector<1x128xf32>
    %cst_11 = arith.constant 1.000000e+00 : f32
    %15 = vector.broadcast %cst_11 : f32 to vector<1x128xf32>
    %16 = arith.addf %15, %14 : vector<1x128xf32>
    %17 = arith.divf %15, %16 : vector<1x128xf32>
    %c0_12 = arith.constant 0 : index
    %c0_13 = arith.constant 0 : index
    %18 = vector.load %arg6[%c0_12, %c0_13] : memref<1x128xf32, #tpu.memory_space<vmem>>, vector<1x128xf32>
    tpu.vector_store %arg6[%c0_12, %c0_13], %17 {strides = array<i32>} : memref<1x128xf32, #tpu.memory_space<vmem>>, vector<1x128xf32>,
    return
  }
  func.func @transform_0(%arg0: i32) -> (i32, i32) {
    %c0_i32 = arith.constant 0 : i32
    %c0_i32_0 = arith.constant 0 : i32
    return %arg0, %c0_i32 : i32, i32
  }
  func.func @transform_1(%arg0: i32) -> (i32, i32) {
    %c0_i32 = arith.constant 0 : i32
    %c0_i32_0 = arith.constant 0 : i32
    %c0_i32_1 = arith.constant 0 : i32
    return %c0_i32, %c0_i32_0 : i32, i32
  }
  func.func @transform_2(%arg0: i32) -> (i32, i32) {
    %c0_i32 = arith.constant 0 : i32
    %c0_i32_0 = arith.constant 0 : i32
    %c0_i32_1 = arith.constant 0 : i32
    return %c0_i32, %c0_i32_0 : i32, i32
  }
  func.func @transform_3(%arg0: i32) -> (i32, i32) {
    %c0_i32 = arith.constant 0 : i32
    %c0_i32_0 = arith.constant 0 : i32
    %c0_i32_1 = arith.constant 0 : i32
    return %c0_i32, %c0_i32_0 : i32, i32
  }
  func.func @transform_4(%arg0: i32) -> (i32, i32) {
    %c0_i32 = arith.constant 0 : i32
    %c0_i32_0 = arith.constant 0 : i32
    %c0_i32_1 = arith.constant 0 : i32
    return %c0_i32, %c0_i32_0 : i32, i32
  }
  func.func @transform_5(%arg0: i32) -> (i32, i32) {
    %c0_i32 = arith.constant 0 : i32
    %c0_i32_0 = arith.constant 0 : i32
    return %c0_i32, %arg0 : i32, i32
  }
}

</mosaic_0001>

<llo_original>
// kernel: tpu_custom_call.1
$region0: #{tpu_custom_call.1}
  #allocation0 [shape = 'u32[]', space=smem, size = 0x4, offset = 0x4, fixed_abs, tag = 'smem constant byte address 0x4 - core index']
  #allocation1 [shape = 'u32[144,128]{1,0:T(1,128)}', space=vmem, size = 0x12000, scoped, tag = 'internal scratch']
  #allocation2 [shape = 'f32[1,1]{1,0:T(1,128)S(6)}', space=smem, size = 0x200, scoped, tag = 'scoped memory for tpu_custom_call.1']
  %s0 = inlined_call_operand.vmem [shape: f32[300,32], index: 0, kind: input, shape index: {}]
  %s1 = inlined_call_operand.vmem [shape: f32[32,16], index: 1, kind: input, shape index: {}]
  %s2 = inlined_call_operand.vmem [shape: f32[1,16], index: 2, kind: input, shape index: {}]
  %s3 = inlined_call_operand.vmem [shape: f32[1,16], index: 3, kind: input, shape index: {}]
  %s4 = inlined_call_operand.<no memory space> [shape: f32[1,1], index: 4, kind: input, shape index: {}]
  %s5 = inlined_call_operand.hbm [shape: f32[1,384], index: 5, kind: output, shape index: {}]
  %s6 = sld [smem:[#allocation0]]
  $region53: #{tpu_custom_call.1} parent=0
    _
  %s8 = ssub.s32 1, %s6
  %s9 = scalar_select 0, %s8, %s6
  %10 = sst [smem:[#allocation2]] %s4
  $region1: #{tpu_custom_call.1} parent=0
    #allocation3 [shape = 'u8[1024]{0}', space=vmem, size = 0x400, scoped, tag = 'output window, operand 0']
    #allocation4 [shape = 's32[2]{0}', space=sflag, size = 0x8, scoped, tag = 'scoped memory for tpu_custom_call.1']
    %11 = vsyncpa [#allocation4], 0
    %s12 = scalar_lea.sflag [#allocation4], 1
    %13 = vsyncpa %s12, 0
    loop: start=0, step=1, limit=5
    $region2: #{tpu_custom_call.1} parent=1 // loop_pre_header
      _
    $region3: #{tpu_custom_call.1} parent=1 // loop_header
      %s15 = sphi 0, %s19
      %p16 = scmp.ge.s32.totalorder %s15, 5
      %s25 = sphi 0, %s27
      %s28 = sphi 0, %s25
      %s29 = sphi 0, %s28
      %s45 = sphi 0, %s29
      %s49 = sphi 0, %s49
      %s51 = sphi 0, %s49
      %s52 = sphi 0, %s51
      %s66 = sphi 0, %s52
      %s70 = sphi 0, %s70
      %s72 = sphi 0, %s70
      %s73 = sphi 0, %s72
      %s87 = sphi 0, %s73
      %s91 = sphi 0, %s91
      %s93 = sphi 0, %s91
      %s94 = sphi 0, %s93
      %s108 = sphi 0, %s94
      %s112 = sphi 0, %s112
      %s114 = sphi 0, %s112
      %s115 = sphi 0, %s114
      %s129 = sphi 0, %s115
      %s135 = sphi 0, %s137
      %s138 = sphi 0, %s135
      %s139 = sphi 0, %s138
      %s155 = sphi 0, %s139
    $region4: #{tpu_custom_call.1} parent=1 // loop_header_branch
      %18 = sbr.rel (%p16) target = $region8
    $region5: #{tpu_custom_call.1} parent=1 // loop_body
      %s20 = ssub.s32 %s15, 1
      %s21 = ssub.s32 %s15, 2
      %s22 = sadd.s32 %s15, 1
      %s23 = ssub.s32 %s15, %s22
      %p24 = scmp.eq.s32.totalorder %s23, 0
      %s26 = sadd.s32 %s25, 1
      %s27 = scalar_select %p24, %s25, %s26
      %p30 = pneg %p24
      %p31 = scmp.eq.s32.totalorder %s15, 2
      %p32 = por %p30, %p31
      %p33 = scmp.ne.s32.totalorder %s25, %s28
      %p34 = scmp.eq.s32.totalorder %s15, 0
      %p35 = por %p33, %p34
      %p36 = scmp.ne.s32.totalorder %s25, %s28
      %p37 = scmp.eq.s32.totalorder %s20, 2
      %p38 = por %p36, %p37
      %p39 = scmp.ne.s32.totalorder %s28, %s29
      %p40 = scmp.eq.s32.totalorder %s20, 0
      %p41 = por %p39, %p40
      %p42 = scmp.ne.s32.totalorder %s28, %s29
      %p43 = scmp.eq.s32.totalorder %s21, 2
      %p44 = por %p42, %p43
      %p46 = scmp.ne.s32.totalorder %s29, %s45
      %p47 = scmp.eq.s32.totalorder %s21, 0
      %p48 = por %p46, %p47
      %s50 = sadd.s32 %s49, 1
      %p53 = scmp.eq.s32.totalorder %s15, 2
      %p54 = scmp.ne.s32.totalorder %s49, %s51
      %p55 = scmp.eq.s32.totalorder %s15, 0
      %p56 = por %p54, %p55
      %p57 = scmp.ne.s32.totalorder %s49, %s51
      %p58 = scmp.eq.s32.totalorder %s20, 2
      %p59 = por %p57, %p58
      %p60 = scmp.ne.s32.totalorder %s51, %s52
      %p61 = scmp.eq.s32.totalorder %s20, 0
      %p62 = por %p60, %p61
      %p63 = scmp.ne.s32.totalorder %s51, %s52
      %p64 = scmp.eq.s32.totalorder %s21, 2
      %p65 = por %p63, %p64
      %p67 = scmp.ne.s32.totalorder %s52, %s66
      %p68 = scmp.eq.s32.totalorder %s21, 0
      %p69 = por %p67, %p68
      %s71 = sadd.s32 %s70, 1
      %p74 = scmp.eq.s32.totalorder %s15, 2
      %p75 = scmp.ne.s32.totalorder %s70, %s72
      %p76 = scmp.eq.s32.totalorder %s15, 0
      %p77 = por %p75, %p76
      %p78 = scmp.ne.s32.totalorder %s70, %s72
      %p79 = scmp.eq.s32.totalorder %s20, 2
      %p80 = por %p78, %p79
      %p81 = scmp.ne.s32.totalorder %s72, %s73
      %p82 = scmp.eq.s32.totalorder %s20, 0
      %p83 = por %p81, %p82
      %p84 = scmp.ne.s32.totalorder %s72, %s73
      %p85 = scmp.eq.s32.totalorder %s21, 2
      %p86 = por %p84, %p85
      %p88 = scmp.ne.s32.totalorder %s73, %s87
      %p89 = scmp.eq.s32.totalorder %s21, 0
      %p90 = por %p88, %p89
      %s92 = sadd.s32 %s91, 1
      %p95 = scmp.eq.s32.totalorder %s15, 2
      %p96 = scmp.ne.s32.totalorder %s91, %s93
      %p97 = scmp.eq.s32.totalorder %s15, 0
      %p98 = por %p96, %p97
      %p99 = scmp.ne.s32.totalorder %s91, %s93
      %p100 = scmp.eq.s32.totalorder %s20, 2
      %p101 = por %p99, %p100
      %p102 = scmp.ne.s32.totalorder %s93, %s94
      %p103 = scmp.eq.s32.totalorder %s20, 0
      %p104 = por %p102, %p103
      %p105 = scmp.ne.s32.totalorder %s93, %s94
      %p106 = scmp.eq.s32.totalorder %s21, 2
      %p107 = por %p105, %p106
      %p109 = scmp.ne.s32.totalorder %s94, %s108
      %p110 = scmp.eq.s32.totalorder %s21, 0
      %p111 = por %p109, %p110
      %s113 = sadd.s32 %s112, 1
      %p116 = scmp.eq.s32.totalorder %s15, 2
      %p117 = scmp.ne.s32.totalorder %s112, %s114
      %p118 = scmp.eq.s32.totalorder %s15, 0
      %p119 = por %p117, %p118
      %p120 = scmp.ne.s32.totalorder %s112, %s114
      %p121 = scmp.eq.s32.totalorder %s20, 2
      %p122 = por %p120, %p121
      %p123 = scmp.ne.s32.totalorder %s114, %s115
      %p124 = scmp.eq.s32.totalorder %s20, 0
      %p125 = por %p123, %p124
      %p126 = scmp.ne.s32.totalorder %s114, %s115
      %p127 = scmp.eq.s32.totalorder %s21, 2
      %p128 = por %p126, %p127
      %p130 = scmp.ne.s32.totalorder %s115, %s129
      %p131 = scmp.eq.s32.totalorder %s21, 0
      %p132 = por %p130, %p131
      %s133 = ssub.s32 %s15, %s22
      %p134 = scmp.eq.s32.totalorder %s133, 0
      %s136 = sadd.s32 %s135, 1
      %s137 = scalar_select %p134, %s135, %s136
      %p140 = pneg %p134
      %p141 = scmp.eq.s32.totalorder %s15, 2
      %p142 = por %p140, %p141
      %p143 = scmp.ne.s32.totalorder %s135, %s138
      %p144 = scmp.eq.s32.totalorder %s15, 0
      %p145 = por %p143, %p144
      %p146 = scmp.ne.s32.totalorder %s135, %s138
      %p147 = scmp.eq.s32.totalorder %s20, 2
      %p148 = por %p146, %p147
      %p149 = scmp.ne.s32.totalorder %s138, %s139
      %p150 = scmp.eq.s32.totalorder %s20, 0
      %p151 = por %p149, %p150
      %p152 = scmp.ne.s32.totalorder %s138, %s139
      %p153 = scmp.eq.s32.totalorder %s21, 2
      %p154 = por %p152, %p153
      %p156 = scmp.ne.s32.totalorder %s139, %s155
      %p157 = scmp.eq.s32.totalorder %s21, 0
      %p158 = por %p156, %p157
      %p159 = scmp.le.s32.totalorder 1, %s15
      %p160 = scmp.lt.s32.totalorder %s15, 4
      %p161 = pnand %p159, %p160
      %p162 = pneg %p161
      // Predicated region
      $region9: #{tpu_custom_call.1} parent=5 // pred_check
        _
      $region10: #{tpu_custom_call.1} parent=5 // pred_check_branch
        %164 = sbr.rel (%p161) target = $region12
      $region11: #{tpu_custom_call.1} parent=5 // pred_region
        %s165 = ssub.s32 %s15, 1
        // Predicated region
        $region13: #{tpu_custom_call.1} parent=11 // pred_check
          %p166 = pneg %p62
        $region14: #{tpu_custom_call.1} parent=11 // pred_check_branch
          %168 = sbr.rel (%p166) target = $region16
        $region15: #{tpu_custom_call.1} parent=11 // pred_region
          _
        $region16: #{tpu_custom_call.1} parent=11 // pred_fallthru
          _
        // Predicated region
        $region17: #{tpu_custom_call.1} parent=11 // pred_check
          %p169 = pneg %p83
        $region18: #{tpu_custom_call.1} parent=11 // pred_check_branch
          %171 = sbr.rel (%p169) target = $region20
        $region19: #{tpu_custom_call.1} parent=11 // pred_region
          _
        $region20: #{tpu_custom_call.1} parent=11 // pred_fallthru
          _
        // Predicated region
        $region21: #{tpu_custom_call.1} parent=11 // pred_check
          %p172 = pneg %p104
        $region22: #{tpu_custom_call.1} parent=11 // pred_check_branch
          %174 = sbr.rel (%p172) target = $region24
        $region23: #{tpu_custom_call.1} parent=11 // pred_region
          _
        $region24: #{tpu_custom_call.1} parent=11 // pred_fallthru
          _
        // Predicated region
        $region25: #{tpu_custom_call.1} parent=11 // pred_check
          %p175 = pneg %p125
        $region26: #{tpu_custom_call.1} parent=11 // pred_check_branch
          %177 = sbr.rel (%p175) target = $region28
        $region27: #{tpu_custom_call.1} parent=11 // pred_region
          _
        $region28: #{tpu_custom_call.1} parent=11 // pred_fallthru
          _
      $region12: #{tpu_custom_call.1} parent=5 // pred_fallthru
        _
      %p178 = scmp.lt.s32.totalorder %s15, 3
      // Predicated region
      $region29: #{tpu_custom_call.1} parent=5 // pred_check
        %p179 = pneg %p178
      $region30: #{tpu_custom_call.1} parent=5 // pred_check_branch
        %181 = sbr.rel (%p179) target = $region32
      $region31: #{tpu_custom_call.1} parent=5 // pred_region
        // Predicated region
        $region33: #{tpu_custom_call.1} parent=31 // pred_check
          %p182 = pneg %p35
        $region34: #{tpu_custom_call.1} parent=31 // pred_check_branch
          %184 = sbr.rel (%p182) target = $region36
        $region35: #{tpu_custom_call.1} parent=31 // pred_region
          %s185 = smul.u32 16, %s15
          %s186 = ssub.s32 38, %s185
          %p187 = scmp.lt.s32.totalorder %s186, 16
          %s188 = scalar_select %p187, %s186, 16
          %s189 = smul.u32 128, %s188
          %p190 = scmp.lt.s32.totalorder %s185, 37
          %s191 = scalar_select %p190, %s185, 37
          %s192 = smul.addr %s191, 8
          %s193 = scalar_lea.vmem %s0, %s192
          %s194 = smul.u32 16, %s15
          %s195 = ssub.s32 38, %s194
          %p196 = scmp.lt.s32.totalorder %s195, 16
          %s197 = scalar_select %p196, %s195, 16
          %s198 = smul.u32 128, %s197
        $region36: #{tpu_custom_call.1} parent=31 // pred_fallthru
          _
      $region32: #{tpu_custom_call.1} parent=5 // pred_fallthru
        _
      %p199 = scmp.le.s32.totalorder 1, %s15
      %p200 = scmp.lt.s32.totalorder %s15, 4
      %p201 = pnand %p199, %p200
      %p202 = pneg %p201
      // Predicated region
      $region37: #{tpu_custom_call.1} parent=5 // pred_check
        _
      $region38: #{tpu_custom_call.1} parent=5 // pred_check_branch
        %204 = sbr.rel (%p201) target = $region40
      $region39: #{tpu_custom_call.1} parent=5 // pred_region
        %s205 = ssub.s32 %s15, 1
        %s206 = smul.u32 16, %s20
        %s207 = ssub.s32 38, %s206
        %p208 = scmp.lt.s32.totalorder %s207, 16
        %s209 = scalar_select %p208, %s207, 16
        %s210 = smul.u32 128, %s209
        %p211 = scmp.lt.s32.totalorder %s206, 37
        %s212 = scalar_select %p211, %s206, 37
        %s213 = smul.addr %s212, 8
        %s214 = scalar_lea.vmem %s0, %s213
        %p215 = pneg %p41
        %p216 = pneg %p38
        %p217 = pneg %p62
        %p218 = pneg %p59
        %p219 = pneg %p83
        %p220 = pneg %p80
        %p221 = pneg %p104
        %p222 = pneg %p101
        %p223 = pneg %p125
        %p224 = pneg %p122
        %p225 = pneg %p151
        %p226 = pneg %p148
        %s227 = sand.u32 %s138, 1
        %s228 = scalar_lea.sflag [#allocation4], %s227
        %s229 = sand.u32 %s138, 1
        %s230 = scalar_lea.vmem [#allocation3], %s229
        %s231 = smul.u32 16, %s20
        %s232 = ssub.s32 38, %s231
        %p233 = scmp.lt.s32.totalorder %s232, 16
        %s234 = scalar_select %p233, %s232, 16
        %s235 = smul.u32 128, %s234
        %p236 = scmp.lt.s32.totalorder %s231, 37
        %s237 = scalar_select %p236, %s231, 37
        %s238 = smul.addr %s237, 8
        %s239 = scalar_lea.vmem %s0, %s238
        %s240 = smul.u32 16, %s20
        %s241 = ssub.s32 38, %s240
        %p242 = scmp.lt.s32.totalorder %s241, 16
        %s243 = scalar_select %p242, %s241, 16
        %s244 = smul.u32 128, %s243
        %v245 = vld [vmem:[%s239] sm:$0xff]
        %v246 = vld [vmem:[%s239 + $0x8] sm:$0xff]
        %v247 = vld [vmem:[%s239 + $0x10] sm:$0xff]
        %v248 = vld [vmem:[%s239 + $0x18] sm:$0xff]
        %v249 = vld [vmem:[%s239 + $0x20] sm:$0xff]
        %v250 = vld [vmem:[%s239 + $0x28] sm:$0xff]
        %v251 = vld [vmem:[%s239 + $0x30] sm:$0xff]
        %v252 = vld [vmem:[%s239 + $0x38] sm:$0xff]
        %v253 = vld [vmem:[%s239 + $0x40] sm:$0xff]
        %v254 = vld [vmem:[%s239 + $0x48] sm:$0xff]
        %v255 = vld [vmem:[%s239 + $0x50] sm:$0xff]
        %v256 = vld [vmem:[%s239 + $0x58] sm:$0xff]
        %v257 = vld [vmem:[%s239 + $0x60] sm:$0xff]
        %v258 = vld [vmem:[%s239 + $0x68] sm:$0xff]
        %v259 = vld [vmem:[%s239 + $0x70] sm:$0xff]
        %v260 = vld [vmem:[%s239 + $0x78] sm:$0xff]
        %v261 = vld [vmem:[%s1] sm:$0xff]
        %v262 = vld [vmem:[%s1 + $0x8] sm:$0xff]
        %v263 = vld [vmem:[%s1 + $0x10] sm:$0xff]
        %v264 = vld [vmem:[%s1 + $0x18] sm:$0xff]
        %v265 = vld [vmem:[%s2] sm:$0x1]
        %v267 = vlaneseq
        %v268 = vshrl.u32 %v267, 7
        %v269 = vsub.s32 0, %v268
        %v270 = vrot.slane %v265, %v269
        %vm272 = vcmask 261120
        %v274 = vsel %vm272, %v245, 0
        %v277 = vsel %vm272, %v246, 0
        %v280 = vsel %vm272, %v247, 0
        %v283 = vsel %vm272, %v248, 0
        %v286 = vsel %vm272, %v249, 0
        %v289 = vsel %vm272, %v250, 0
        %v292 = vsel %vm272, %v251, 0
        %v295 = vsel %vm272, %v252, 0
        %v298 = vsel %vm272, %v253, 0
        %v301 = vsel %vm272, %v254, 0
        %v304 = vsel %vm272, %v255, 0
        %v307 = vsel %vm272, %v256, 0
        %v310 = vsel %vm272, %v257, 0
        %v313 = vsel %vm272, %v258, 0
        %v316 = vsel %vm272, %v259, 0
        %v319 = vsel %vm272, %v260, 0
        %321 = vmatprep.subr.mxu0 0.0
        %322 = vmatpush1.msra.mxu0 0.0
        %323 = vmatprep.subr.mxu0 0.0
        %324 = vmatpush1.msra.mxu0 0.0
        %325 = vmatprep.subr.mxu0 0.0
        %326 = vmatpush1.msra.mxu0 0.0
        %327 = vmatprep.subr.mxu0 0.0
        %328 = vmatpush1.msra.mxu0 0.0
        %329 = vmatprep.subr.mxu0 0.0
        %330 = vmatpush1.msra.mxu0 0.0
        %331 = vmatprep.subr.mxu0 0.0
        %332 = vmatpush1.msra.mxu0 0.0
        %333 = vmatprep.subr.mxu0 0.0
        %334 = vmatpush1.msra.mxu0 0.0
        %335 = vmatprep.subr.mxu0 0.0
        %336 = vmatpush1.msra.mxu0 0.0
        %337 = vmatprep.subr.mxu0 0.0
        %338 = vmatpush1.msra.mxu0 0.0
        %339 = vmatprep.subr.mxu0 0.0
        %340 = vmatpush1.msra.mxu0 0.0
        %341 = vmatprep.subr.mxu0 0.0
        %342 = vmatpush1.msra.mxu0 0.0
        %343 = vmatprep.subr.mxu0 0.0
        %344 = vmatpush1.msra.mxu0 0.0
        %345 = vmatprep.subr.mxu0 0.0
        %346 = vmatpush1.msra.mxu0 %v264
        %347 = vmatprep.subr.mxu0 0.0
        %348 = vmatpush1.msra.mxu0 %v263
        %349 = vmatprep.subr.mxu0 0.0
        %350 = vmatpush1.msra.mxu0 %v262
        %351 = vmatprep.subr.mxu0 0.0
        %352 = vmatpush1.msra.mxu0 %v261
        %353 = vmatprep.subr.mxu0 0.0
        %354 = vmatpush2.msra.mxu0 0.0
        %355 = vmatprep.subr.mxu0 0.0
        %356 = vmatpush2.msra.mxu0 0.0
        %357 = vmatprep.subr.mxu0 0.0
        %358 = vmatpush2.msra.mxu0 0.0
        %359 = vmatprep.subr.mxu0 0.0
        %360 = vmatpush2.msra.mxu0 0.0
        %361 = vmatprep.subr.mxu0 0.0
        %362 = vmatpush2.msra.mxu0 0.0
        %363 = vmatprep.subr.mxu0 0.0
        %364 = vmatpush2.msra.mxu0 0.0
        %365 = vmatprep.subr.mxu0 0.0
        %366 = vmatpush2.msra.mxu0 0.0
        %367 = vmatprep.subr.mxu0 0.0
        %368 = vmatpush2.msra.mxu0 0.0
        %369 = vmatprep.subr.mxu0 0.0
        %370 = vmatpush2.msra.mxu0 0.0
        %371 = vmatprep.subr.mxu0 0.0
        %372 = vmatpush2.msra.mxu0 0.0
        %373 = vmatprep.subr.mxu0 0.0
        %374 = vmatpush2.msra.mxu0 0.0
        %375 = vmatprep.subr.mxu0 0.0
        %376 = vmatpush2.msra.mxu0 0.0
        %377 = vmatprep.subr.mxu0 0.0
        %378 = vmatpush2.msra.mxu0 0.0
        %379 = vmatprep.subr.mxu0 0.0
        %380 = vmatpush2.msra.mxu0 0.0
        %381 = vmatprep.subr.mxu0 0.0
        %382 = vmatpush2.msra.mxu0 0.0
        %383 = vmatprep.subr.mxu0 0.0
        %384 = vmatpush2.msra.mxu0 0.0
        %385 = vmatprep.mubr.f32.mxu0 0.0
        %386 = vmatmul.mubr.f32.gmra.mxu0 %v274
        %v387 = vpop.f32.mrf.mxu0
        %v388 = vadd.f32 %v270, %v387
        %v389 = vpop.f32.mrf.mxu0
        %390 = vmatprep.mubr.f32.mxu0 0.0
        %391 = vmatmul.mubr.f32.gmra.mxu0 %v277
        %v392 = vpop.f32.mrf.mxu0
        %v393 = vadd.f32 %v270, %v392
        %v394 = vpop.f32.mrf.mxu0
        %395 = vmatprep.mubr.f32.mxu0 0.0
        %396 = vmatmul.mubr.f32.gmra.mxu0 %v280
        %v397 = vpop.f32.mrf.mxu0
        %v398 = vadd.f32 %v270, %v397
        %v399 = vpop.f32.mrf.mxu0
        %400 = vmatprep.mubr.f32.mxu0 0.0
        %401 = vmatmul.mubr.f32.gmra.mxu0 %v283
        %v402 = vpop.f32.mrf.mxu0
        %v403 = vadd.f32 %v270, %v402
        %v404 = vpop.f32.mrf.mxu0
        %405 = vmatprep.mubr.f32.mxu0 0.0
        %406 = vmatmul.mubr.f32.gmra.mxu0 %v286
        %v407 = vpop.f32.mrf.mxu0
        %v408 = vadd.f32 %v270, %v407
        %v409 = vpop.f32.mrf.mxu0
        %410 = vmatprep.mubr.f32.mxu0 0.0
        %411 = vmatmul.mubr.f32.gmra.mxu0 %v289
        %v412 = vpop.f32.mrf.mxu0
        %v413 = vadd.f32 %v270, %v412
        %v414 = vpop.f32.mrf.mxu0
        %415 = vmatprep.mubr.f32.mxu0 0.0
        %416 = vmatmul.mubr.f32.gmra.mxu0 %v292
        %v417 = vpop.f32.mrf.mxu0
        %v418 = vadd.f32 %v270, %v417
        %v419 = vpop.f32.mrf.mxu0
        %420 = vmatprep.mubr.f32.mxu0 0.0
        %421 = vmatmul.mubr.f32.gmra.mxu0 %v295
        %v422 = vpop.f32.mrf.mxu0
        %v423 = vadd.f32 %v270, %v422
        %v424 = vpop.f32.mrf.mxu0
        %425 = vmatprep.mubr.f32.mxu0 0.0
        %426 = vmatmul.mubr.f32.gmra.mxu0 %v298
        %v427 = vpop.f32.mrf.mxu0
        %v428 = vadd.f32 %v270, %v427
        %v429 = vpop.f32.mrf.mxu0
        %430 = vmatprep.mubr.f32.mxu0 0.0
        %431 = vmatmul.mubr.f32.gmra.mxu0 %v301
        %v432 = vpop.f32.mrf.mxu0
        %v433 = vadd.f32 %v270, %v432
        %v434 = vpop.f32.mrf.mxu0
        %435 = vmatprep.mubr.f32.mxu0 0.0
        %436 = vmatmul.mubr.f32.gmra.mxu0 %v304
        %v437 = vpop.f32.mrf.mxu0
        %v438 = vadd.f32 %v270, %v437
        %v439 = vpop.f32.mrf.mxu0
        %440 = vmatprep.mubr.f32.mxu0 0.0
        %441 = vmatmul.mubr.f32.gmra.mxu0 %v307
        %v442 = vpop.f32.mrf.mxu0
        %v443 = vadd.f32 %v270, %v442
        %v444 = vpop.f32.mrf.mxu0
        %445 = vmatprep.mubr.f32.mxu0 0.0
        %446 = vmatmul.mubr.f32.gmra.mxu0 %v310
        %v447 = vpop.f32.mrf.mxu0
        %v448 = vadd.f32 %v270, %v447
        %v449 = vpop.f32.mrf.mxu0
        %450 = vmatprep.mubr.f32.mxu0 0.0
        %451 = vmatmul.mubr.f32.gmra.mxu0 %v313
        %v452 = vpop.f32.mrf.mxu0
        %v453 = vadd.f32 %v270, %v452
        %v454 = vpop.f32.mrf.mxu0
        %455 = vmatprep.mubr.f32.mxu0 0.0
        %456 = vmatmul.mubr.f32.gmra.mxu0 %v316
        %v457 = vpop.f32.mrf.mxu0
        %v458 = vadd.f32 %v270, %v457
        %v459 = vpop.f32.mrf.mxu0
        %460 = vmatprep.mubr.f32.mxu0 0.0
        %461 = vmatmul.mubr.f32.gmra.mxu0 %v319
        %v462 = vpop.f32.mrf.mxu0
        %v463 = vadd.f32 %v270, %v462
        %v464 = vpop.f32.mrf.mxu0
        %465 = vdwg.mxu0
        %v466 = vmax.f32 %v388, 0.0
        %v467 = vmax.f32 %v393, 0.0
        %v468 = vmax.f32 %v398, 0.0
        %v469 = vmax.f32 %v403, 0.0
        %v470 = vmax.f32 %v408, 0.0
        %v471 = vmax.f32 %v413, 0.0
        %v472 = vmax.f32 %v418, 0.0
        %v473 = vmax.f32 %v423, 0.0
        %v474 = vmax.f32 %v428, 0.0
        %v475 = vmax.f32 %v433, 0.0
        %v476 = vmax.f32 %v438, 0.0
        %v477 = vmax.f32 %v443, 0.0
        %v478 = vmax.f32 %v448, 0.0
        %v479 = vmax.f32 %v453, 0.0
        %v480 = vmax.f32 %v458, 0.0
        %v481 = vmax.f32 %v463, 0.0
        %v482 = vld [vmem:[%s3] sm:$0x1]
        %s483 = sld [smem:[#allocation2]]
        %v484 = vstv %s483
        %vm485 = vcmask 130048
        %v487 = vsel %vm485, %v482, 0
        %v490 = vsel %vm485, %v466, 0
        %v493 = vsel %vm485, %v467, 0
        %v496 = vsel %vm485, %v468, 0
        %v499 = vsel %vm485, %v469, 0
        %v502 = vsel %vm485, %v470, 0
        %v505 = vsel %vm485, %v471, 0
        %v508 = vsel %vm485, %v472, 0
        %v511 = vsel %vm485, %v473, 0
        %v514 = vsel %vm485, %v474, 0
        %v517 = vsel %vm485, %v475, 0
        %v520 = vsel %vm485, %v476, 0
        %v523 = vsel %vm485, %v477, 0
        %v526 = vsel %vm485, %v478, 0
        %v529 = vsel %vm485, %v479, 0
        %v532 = vsel %vm485, %v480, 0
        %v535 = vsel %vm485, %v481, 0
        %537 = vmatprep.subr.mxu0 0.0
        %538 = vmatpush1.xpose.msra.mxu0 %v535
        %539 = vmatprep.subr.mxu0 0.0
        %540 = vmatpush1.xpose.msra.mxu0 %v532
        %541 = vmatprep.subr.mxu0 0.0
        %542 = vmatpush1.xpose.msra.mxu0 %v529
        %543 = vmatprep.subr.mxu0 0.0
        %544 = vmatpush1.xpose.msra.mxu0 %v526
        %545 = vmatprep.subr.mxu0 0.0
        %546 = vmatpush1.xpose.msra.mxu0 %v523
        %547 = vmatprep.subr.mxu0 0.0
        %548 = vmatpush1.xpose.msra.mxu0 %v520
        %549 = vmatprep.subr.mxu0 0.0
        %550 = vmatpush1.xpose.msra.mxu0 %v517
        %551 = vmatprep.subr.mxu0 0.0
        %552 = vmatpush1.xpose.msra.mxu0 %v514
        %553 = vmatprep.subr.mxu0 0.0
        %554 = vmatpush1.xpose.msra.mxu0 %v511
        %555 = vmatprep.subr.mxu0 0.0
        %556 = vmatpush1.xpose.msra.mxu0 %v508
        %557 = vmatprep.subr.mxu0 0.0
        %558 = vmatpush1.xpose.msra.mxu0 %v505
        %559 = vmatprep.subr.mxu0 0.0
        %560 = vmatpush1.xpose.msra.mxu0 %v502
        %561 = vmatprep.subr.mxu0 0.0
        %562 = vmatpush1.xpose.msra.mxu0 %v499
        %563 = vmatprep.subr.mxu0 0.0
        %564 = vmatpush1.xpose.msra.mxu0 %v496
        %565 = vmatprep.subr.mxu0 0.0
        %566 = vmatpush1.xpose.msra.mxu0 %v493
        %567 = vmatprep.subr.mxu0 0.0
        %568 = vmatpush1.xpose.msra.mxu0 %v490
        %569 = vmatprep.subr.mxu0 0.0
        %570 = vmatpush2.xpose.msra.mxu0 0.0
        %571 = vmatprep.subr.mxu0 0.0
        %572 = vmatpush2.xpose.msra.mxu0 0.0
        %573 = vmatprep.subr.mxu0 0.0
        %574 = vmatpush2.xpose.msra.mxu0 0.0
        %575 = vmatprep.subr.mxu0 0.0
        %576 = vmatpush2.xpose.msra.mxu0 0.0
        %577 = vmatprep.subr.mxu0 0.0
        %578 = vmatpush2.xpose.msra.mxu0 0.0
        %579 = vmatprep.subr.mxu0 0.0
        %580 = vmatpush2.xpose.msra.mxu0 0.0
        %581 = vmatprep.subr.mxu0 0.0
        %582 = vmatpush2.xpose.msra.mxu0 0.0
        %583 = vmatprep.subr.mxu0 0.0
        %584 = vmatpush2.xpose.msra.mxu0 0.0
        %585 = vmatprep.subr.mxu0 0.0
        %586 = vmatpush2.xpose.msra.mxu0 0.0
        %587 = vmatprep.subr.mxu0 0.0
        %588 = vmatpush2.xpose.msra.mxu0 0.0
        %589 = vmatprep.subr.mxu0 0.0
        %590 = vmatpush2.xpose.msra.mxu0 0.0
        %591 = vmatprep.subr.mxu0 0.0
        %592 = vmatpush2.xpose.msra.mxu0 0.0
        %593 = vmatprep.subr.mxu0 0.0
        %594 = vmatpush2.xpose.msra.mxu0 0.0
        %595 = vmatprep.subr.mxu0 0.0
        %596 = vmatpush2.xpose.msra.mxu0 0.0
        %597 = vmatprep.subr.mxu0 0.0
        %598 = vmatpush2.xpose.msra.mxu0 0.0
        %599 = vmatprep.subr.mxu0 0.0
        %600 = vmatpush2.xpose.msra.mxu0 0.0
        %601 = vmatprep.mubr.f32.mxu0 0.0
        %602 = vmatmul.mubr.f32.gmra.mxu0 %v487
        %v603 = vpop.f32.mrf.mxu0
        %v604 = vadd.f32 %v484, %v603
        %v605 = vpop.f32.mrf.mxu0
        %606 = vdwg.mxu0
        %v607 = vxor.u32 %v604, 2147483648
        %v608 = vmul.f32 %v607, 1.442695
        %v609 = vpow.pop %v608
        %v610 = vadd.f32 %v609, 1.0
        %v611 = vrcp.pop %v610
        %v612 = vmul.f32 1.0, %v611
        %613 = vst [vmem:[%s230] sm:$0x1] %v612
        %s614 = sand.u32 %s138, 1
        %s615 = scalar_lea.sflag [#allocation4], %s614
        %s616 = sand.u32 %s138, 1
        %s617 = scalar_lea.vmem [#allocation3], %s616
        // Predicated region
        $region41: #{tpu_custom_call.1} parent=39 // pred_check
          %p618 = pneg %p148
        $region42: #{tpu_custom_call.1} parent=39 // pred_check_branch
          %620 = sbr.rel (%p618) target = $region44
        $region43: #{tpu_custom_call.1} parent=39 // pred_region
          %s622 = ssub.s32 16, 16
          %623 = vsyncadd %s615, %s622
          %s624 = smul.addr %s20, 16
          %s625 = scalar_lea.hbm %s5, %s624
          %s627 = sshll.u32 %s617, 4
          %s628 = int_to_ptr.vmem [resolvable:$true] %s627
          %630 = dma.vmem_to_hbm [thread:$0]  %s628, 16, %s625, %s615
        $region44: #{tpu_custom_call.1} parent=39 // pred_fallthru
          _
      $region40: #{tpu_custom_call.1} parent=5 // pred_fallthru
        _
      %p631 = scmp.le.s32.totalorder 2, %s15
      // Predicated region
      $region45: #{tpu_custom_call.1} parent=5 // pred_check
        %p632 = pneg %p631
      $region46: #{tpu_custom_call.1} parent=5 // pred_check_branch
        %634 = sbr.rel (%p632) target = $region48
      $region47: #{tpu_custom_call.1} parent=5 // pred_region
        %s635 = ssub.s32 %s15, 2
        // Predicated region
        $region49: #{tpu_custom_call.1} parent=47 // pred_check
          %p636 = pneg %p154
        $region50: #{tpu_custom_call.1} parent=47 // pred_check_branch
          %638 = sbr.rel (%p636) target = $region52
        $region51: #{tpu_custom_call.1} parent=47 // pred_region
          %s639 = sand.u32 %s139, 1
          %s640 = scalar_lea.sflag [#allocation4], %s639
          %s641 = sand.u32 %s139, 1
          %s642 = scalar_lea.vmem [#allocation3], %s641
          %643 = dma.done %s640, 16
        $region52: #{tpu_custom_call.1} parent=47 // pred_fallthru
          _
      $region48: #{tpu_custom_call.1} parent=5 // pred_fallthru
        _
    $region6: #{tpu_custom_call.1} parent=1 // loop_footer
      %s19 = sadd.s32 1, %s15
    $region7: #{tpu_custom_call.1} parent=1 // loop_footer_branch
      %14 = sbr.rel target = $region3
    $region8: #{tpu_custom_call.1} parent=1 // loop_exit
      _
    %644 = vsyncpa [#allocation4], 1
    %s645 = scalar_lea.sflag [#allocation4], 1
    %646 = vsyncpa %s645, 1

// kernel: tpu_custom_call.1
$region0: #{tpu_custom_call.1}
  #allocation0 [shape = 'u32[]', space=smem, size = 0x4, offset = 0x4, fixed_abs, tag = 'smem constant byte address 0x4 - core index']
  #allocation1 [shape = 'u32[144,128]{1,0:T(1,128)}', space=vmem, size = 0x12000, scoped, tag = 'internal scratch']
  #allocation2 [shape = 'f32[1,1]{1,0:T(1,128)S(6)}', space=smem, size = 0x200, scoped, tag = 'scoped memory for tpu_custom_call.1']
  %s0 = inlined_call_operand.vmem [shape: f32[300,32], index: 0, kind: input, shape index: {}]
  %s1 = inlined_call_operand.vmem [shape: f32[32,16], index: 1, kind: input, shape index: {}]
  %s2 = inlined_call_operand.vmem [shape: f32[1,16], index: 2, kind: input, shape index: {}]
  %s3 = inlined_call_operand.vmem [shape: f32[1,16], index: 3, kind: input, shape index: {}]
  %s4 = inlined_call_operand.<no memory space> [shape: f32[1,1], index: 4, kind: input, shape index: {}]
  %s5 = inlined_call_operand.hbm [shape: f32[1,384], index: 5, kind: output, shape index: {}]
  %s6 = sld [smem:[#allocation0]]
  $region53: #{tpu_custom_call.1} parent=0
    _
  %s8 = ssub.s32 1, %s6
  %s9 = scalar_select 0, %s8, %s6
  %10 = sst [smem:[#allocation2]] %s4
  $region1: #{tpu_custom_call.1} parent=0
    #allocation3 [shape = 'u8[1024]{0}', space=vmem, size = 0x400, scoped, tag = 'output window, operand 0']
    #allocation4 [shape = 's32[2]{0}', space=sflag, size = 0x8, scoped, tag = 'scoped memory for tpu_custom_call.1']
    %11 = vsyncpa [#allocation4], 0
    %s12 = scalar_lea.sflag [#allocation4], 1
    %13 = vsyncpa %s12, 0
    loop: start=0, step=1, limit=5
    $region2: #{tpu_custom_call.1} parent=1 // loop_pre_header
      _
    $region3: #{tpu_custom_call.1} parent=1 // loop_header
      %s15 = sphi 0, %s19
      %p16 = scmp.ge.s32.totalorder %s15, 5
      %s25 = sphi 0, %s27
      %s28 = sphi 0, %s25
      %s29 = sphi 0, %s28
      %s45 = sphi 0, %s29
      %s49 = sphi 0, %s49
      %s51 = sphi 0, %s49
      %s52 = sphi 0, %s51
      %s66 = sphi 0, %s52
      %s70 = sphi 0, %s70
      %s72 = sphi 0, %s70
      %s73 = sphi 0, %s72
      %s87 = sphi 0, %s73
      %s91 = sphi 0, %s91
      %s93 = sphi 0, %s91
      %s94 = sphi 0, %s93
      %s108 = sphi 0, %s94
      %s112 = sphi 0, %s112
      %s114 = sphi 0, %s112
      %s115 = sphi 0, %s114
      %s129 = sphi 0, %s115
      %s135 = sphi 0, %s137
      %s138 = sphi 0, %s135
      %s139 = sphi 0, %s138
      %s155 = sphi 0, %s139
    $region4: #{tpu_custom_call.1} parent=1 // loop_header_branch
      %18 = sbr.rel (%p16) target = $region8
    $region5: #{tpu_custom_call.1} parent=1 // loop_body
      %s20 = ssub.s32 %s15, 1
      %s21 = ssub.s32 %s15, 2
      %s22 = sadd.s32 %s15, 1
      %s23 = ssub.s32 %s15, %s22
      %p24 = scmp.eq.s32.totalorder %s23, 0
      %s26 = sadd.s32 %s25, 1
      %s27 = scalar_select %p24, %s25, %s26
      %p30 = pneg %p24
      %p31 = scmp.eq.s32.totalorder %s15, 2
      %p32 = por %p30, %p31
      %p33 = scmp.ne.s32.totalorder %s25, %s28
      %p34 = scmp.eq.s32.totalorder %s15, 0
      %p35 = por %p33, %p34
      %p36 = scmp.ne.s32.totalorder %s25, %s28
      %p37 = scmp.eq.s32.totalorder %s20, 2
      %p38 = por %p36, %p37
      %p39 = scmp.ne.s32.totalorder %s28, %s29
      %p40 = scmp.eq.s32.totalorder %s20, 0
      %p41 = por %p39, %p40
      %p42 = scmp.ne.s32.totalorder %s28, %s29
      %p43 = scmp.eq.s32.totalorder %s21, 2
      %p44 = por %p42, %p43
      %p46 = scmp.ne.s32.totalorder %s29, %s45
      %p47 = scmp.eq.s32.totalorder %s21, 0
      %p48 = por %p46, %p47
      %s50 = sadd.s32 %s49, 1
      %p53 = scmp.eq.s32.totalorder %s15, 2
      %p54 = scmp.ne.s32.totalorder %s49, %s51
      %p55 = scmp.eq.s32.totalorder %s15, 0
      %p56 = por %p54, %p55
      %p57 = scmp.ne.s32.totalorder %s49, %s51
      %p58 = scmp.eq.s32.totalorder %s20, 2
      %p59 = por %p57, %p58
      %p60 = scmp.ne.s32.totalorder %s51, %s52
      %p61 = scmp.eq.s32.totalorder %s20, 0
      %p62 = por %p60, %p61
      %p63 = scmp.ne.s32.totalorder %s51, %s52
      %p64 = scmp.eq.s32.totalorder %s21, 2
      %p65 = por %p63, %p64
      %p67 = scmp.ne.s32.totalorder %s52, %s66
      %p68 = scmp.eq.s32.totalorder %s21, 0
      %p69 = por %p67, %p68
      %s71 = sadd.s32 %s70, 1
      %p74 = scmp.eq.s32.totalorder %s15, 2
      %p75 = scmp.ne.s32.totalorder %s70, %s72
      %p76 = scmp.eq.s32.totalorder %s15, 0
      %p77 = por %p75, %p76
      %p78 = scmp.ne.s32.totalorder %s70, %s72
      %p79 = scmp.eq.s32.totalorder %s20, 2
      %p80 = por %p78, %p79
      %p81 = scmp.ne.s32.totalorder %s72, %s73
      %p82 = scmp.eq.s32.totalorder %s20, 0
      %p83 = por %p81, %p82
      %p84 = scmp.ne.s32.totalorder %s72, %s73
      %p85 = scmp.eq.s32.totalorder %s21, 2
      %p86 = por %p84, %p85
      %p88 = scmp.ne.s32.totalorder %s73, %s87
      %p89 = scmp.eq.s32.totalorder %s21, 0
      %p90 = por %p88, %p89
      %s92 = sadd.s32 %s91, 1
      %p95 = scmp.eq.s32.totalorder %s15, 2
      %p96 = scmp.ne.s32.totalorder %s91, %s93
      %p97 = scmp.eq.s32.totalorder %s15, 0
      %p98 = por %p96, %p97
      %p99 = scmp.ne.s32.totalorder %s91, %s93
      %p100 = scmp.eq.s32.totalorder %s20, 2
      %p101 = por %p99, %p100
      %p102 = scmp.ne.s32.totalorder %s93, %s94
      %p103 = scmp.eq.s32.totalorder %s20, 0
      %p104 = por %p102, %p103
      %p105 = scmp.ne.s32.totalorder %s93, %s94
      %p106 = scmp.eq.s32.totalorder %s21, 2
      %p107 = por %p105, %p106
      %p109 = scmp.ne.s32.totalorder %s94, %s108
      %p110 = scmp.eq.s32.totalorder %s21, 0
      %p111 = por %p109, %p110
      %s113 = sadd.s32 %s112, 1
      %p116 = scmp.eq.s32.totalorder %s15, 2
      %p117 = scmp.ne.s32.totalorder %s112, %s114
      %p118 = scmp.eq.s32.totalorder %s15, 0
      %p119 = por %p117, %p118
      %p120 = scmp.ne.s32.totalorder %s112, %s114
      %p121 = scmp.eq.s32.totalorder %s20, 2
      %p122 = por %p120, %p121
      %p123 = scmp.ne.s32.totalorder %s114, %s115
      %p124 = scmp.eq.s32.totalorder %s20, 0
      %p125 = por %p123, %p124
      %p126 = scmp.ne.s32.totalorder %s114, %s115
      %p127 = scmp.eq.s32.totalorder %s21, 2
      %p128 = por %p126, %p127
      %p130 = scmp.ne.s32.totalorder %s115, %s129
      %p131 = scmp.eq.s32.totalorder %s21, 0
      %p132 = por %p130, %p131
      %s133 = ssub.s32 %s15, %s22
      %p134 = scmp.eq.s32.totalorder %s133, 0
      %s136 = sadd.s32 %s135, 1
      %s137 = scalar_select %p134, %s135, %s136
      %p140 = pneg %p134
      %p141 = scmp.eq.s32.totalorder %s15, 2
      %p142 = por %p140, %p141
      %p143 = scmp.ne.s32.totalorder %s135, %s138
      %p144 = scmp.eq.s32.totalorder %s15, 0
      %p145 = por %p143, %p144
      %p146 = scmp.ne.s32.totalorder %s135, %s138
      %p147 = scmp.eq.s32.totalorder %s20, 2
      %p148 = por %p146, %p147
      %p149 = scmp.ne.s32.totalorder %s138, %s139
      %p150 = scmp.eq.s32.totalorder %s20, 0
      %p151 = por %p149, %p150
      %p152 = scmp.ne.s32.totalorder %s138, %s139
      %p153 = scmp.eq.s32.totalorder %s21, 2
      %p154 = por %p152, %p153
      %p156 = scmp.ne.s32.totalorder %s139, %s155
      %p157 = scmp.eq.s32.totalorder %s21, 0
      %p158 = por %p156, %p157
      %p159 = scmp.le.s32.totalorder 1, %s15
      %p160 = scmp.lt.s32.totalorder %s15, 4
      %p161 = pnand %p159, %p160
      %p162 = pneg %p161
      // Predicated region
      $region9: #{tpu_custom_call.1} parent=5 // pred_check
        _
      $region10: #{tpu_custom_call.1} parent=5 // pred_check_branch
        %164 = sbr.rel (%p161) target = $region12
      $region11: #{tpu_custom_call.1} parent=5 // pred_region
        %s165 = ssub.s32 %s15, 1
        // Predicated region
        $region13: #{tpu_custom_call.1} parent=11 // pred_check
          %p166 = pneg %p62
        $region14: #{tpu_custom_call.1} parent=11 // pred_check_branch
          %168 = sbr.rel (%p166) target = $region16
        $region15: #{tpu_custom_call.1} parent=11 // pred_region
          _
        $region16: #{tpu_custom_call.1} parent=11 // pred_fallthru
          _
        // Predicated region
        $region17: #{tpu_custom_call.1} parent=11 // pred_check
          %p169 = pneg %p83
        $region18: #{tpu_custom_call.1} parent=11 // pred_check_branch
          %171 = sbr.rel (%p169) target = $region20
        $region19: #{tpu_custom_call.1} parent=11 // pred_region
          _
        $region20: #{tpu_custom_call.1} parent=11 // pred_fallthru
          _
        // Predicated region
        $region21: #{tpu_custom_call.1} parent=11 // pred_check
          %p172 = pneg %p104
        $region22: #{tpu_custom_call.1} parent=11 // pred_check_branch
          %174 = sbr.rel (%p172) target = $region24
        $region23: #{tpu_custom_call.1} parent=11 // pred_region
          _
        $region24: #{tpu_custom_call.1} parent=11 // pred_fallthru
          _
        // Predicated region
        $region25: #{tpu_custom_call.1} parent=11 // pred_check
          %p175 = pneg %p125
        $region26: #{tpu_custom_call.1} parent=11 // pred_check_branch
          %177 = sbr.rel (%p175) target = $region28
        $region27: #{tpu_custom_call.1} parent=11 // pred_region
          _
        $region28: #{tpu_custom_call.1} parent=11 // pred_fallthru
          _
      $region12: #{tpu_custom_call.1} parent=5 // pred_fallthru
        _
      %p178 = scmp.lt.s32.totalorder %s15, 3
      // Predicated region
      $region29: #{tpu_custom_call.1} parent=5 // pred_check
        %p179 = pneg %p178
      $region30: #{tpu_custom_call.1} parent=5 // pred_check_branch
        %181 = sbr.rel (%p179) target = $region32
      $region31: #{tpu_custom_call.1} parent=5 // pred_region
        // Predicated region
        $region33: #{tpu_custom_call.1} parent=31 // pred_check
          %p182 = pneg %p35
        $region34: #{tpu_custom_call.1} parent=31 // pred_check_branch
          %184 = sbr.rel (%p182) target = $region36
        $region35: #{tpu_custom_call.1} parent=31 // pred_region
          %s185 = smul.u32 16, %s15
          %s186 = ssub.s32 38, %s185
          %p187 = scmp.lt.s32.totalorder %s186, 16
          %s188 = scalar_select %p187, %s186, 16
          %s189 = smul.u32 128, %s188
          %p190 = scmp.lt.s32.totalorder %s185, 37
          %s191 = scalar_select %p190, %s185, 37
          %s192 = smul.addr %s191, 8
          %s193 = scalar_lea.vmem %s0, %s192
          %s194 = smul.u32 16, %s15
          %s195 = ssub.s32 38, %s194
          %p196 = scmp.lt.s32.totalorder %s195, 16
          %s197 = scalar_select %p196, %s195, 16
          %s198 = smul.u32 128, %s197
        $region36: #{tpu_custom_call.1} parent=31 // pred_fallthru
          _
      $region32: #{tpu_custom_call.1} parent=5 // pred_fallthru
        _
      %p199 = scmp.le.s32.totalorder 1, %s15
      %p200 = scmp.lt.s32.totalorder %s15, 4
      %p201 = pnand %p199, %p200
      %p202 = pneg %p201
      // Predicated region
      $region37: #{tpu_custom_call.1} parent=5 // pred_check
        _
      $region38: #{tpu_custom_call.1} parent=5 // pred_check_branch
        %204 = sbr.rel (%p201) target = $region40
      $region39: #{tpu_custom_call.1} parent=5 // pred_region
        %s205 = ssub.s32 %s15, 1
        %s206 = smul.u32 16, %s20
        %s207 = ssub.s32 38, %s206
        %p208 = scmp.lt.s32.totalorder %s207, 16
        %s209 = scalar_select %p208, %s207, 16
        %s210 = smul.u32 128, %s209
        %p211 = scmp.lt.s32.totalorder %s206, 37
        %s212 = scalar_select %p211, %s206, 37
        %s213 = smul.addr %s212, 8
        %s214 = scalar_lea.vmem %s0, %s213
        %p215 = pneg %p41
        %p216 = pneg %p38
        %p217 = pneg %p62
        %p218 = pneg %p59
        %p219 = pneg %p83
        %p220 = pneg %p80
        %p221 = pneg %p104
        %p222 = pneg %p101
        %p223 = pneg %p125
        %p224 = pneg %p122
        %p225 = pneg %p151
        %p226 = pneg %p148
        %s227 = sand.u32 %s138, 1
        %s228 = scalar_lea.sflag [#allocation4], %s227
        %s229 = sand.u32 %s138, 1
        %s230 = scalar_lea.vmem [#allocation3], %s229
        %s231 = smul.u32 16, %s20
        %s232 = ssub.s32 38, %s231
        %p233 = scmp.lt.s32.totalorder %s232, 16
        %s234 = scalar_select %p233, %s232, 16
        %s235 = smul.u32 128, %s234
        %p236 = scmp.lt.s32.totalorder %s231, 37
        %s237 = scalar_select %p236, %s231, 37
        %s238 = smul.addr %s237, 8
        %s239 = scalar_lea.vmem %s0, %s238
        %s240 = smul.u32 16, %s20
        %s241 = ssub.s32 38, %s240
        %p242 = scmp.lt.s32.totalorder %s241, 16
        %s243 = scalar_select %p242, %s241, 16
        %s244 = smul.u32 128, %s243
        %v245 = vld [vmem:[%s239] sm:$0xff]
        %v246 = vld [vmem:[%s239 + $0x8] sm:$0xff]
        %v247 = vld [vmem:[%s239 + $0x10] sm:$0xff]
        %v248 = vld [vmem:[%s239 + $0x18] sm:$0xff]
        %v249 = vld [vmem:[%s239 + $0x20] sm:$0xff]
        %v250 = vld [vmem:[%s239 + $0x28] sm:$0xff]
        %v251 = vld [vmem:[%s239 + $0x30] sm:$0xff]
        %v252 = vld [vmem:[%s239 + $0x38] sm:$0xff]
        %v253 = vld [vmem:[%s239 + $0x40] sm:$0xff]
        %v254 = vld [vmem:[%s239 + $0x48] sm:$0xff]
        %v255 = vld [vmem:[%s239 + $0x50] sm:$0xff]
        %v256 = vld [vmem:[%s239 + $0x58] sm:$0xff]
        %v257 = vld [vmem:[%s239 + $0x60] sm:$0xff]
        %v258 = vld [vmem:[%s239 + $0x68] sm:$0xff]
        %v259 = vld [vmem:[%s239 + $0x70] sm:$0xff]
        %v260 = vld [vmem:[%s239 + $0x78] sm:$0xff]
        %v261 = vld [vmem:[%s1] sm:$0xff]
        %v262 = vld [vmem:[%s1 + $0x8] sm:$0xff]
        %v263 = vld [vmem:[%s1 + $0x10] sm:$0xff]
        %v264 = vld [vmem:[%s1 + $0x18] sm:$0xff]
        %v265 = vld [vmem:[%s2] sm:$0x1]
        %v267 = vlaneseq
        %v268 = vshrl.u32 %v267, 7
        %v269 = vsub.s32 0, %v268
        %v270 = vrot.slane %v265, %v269
        %vm272 = vcmask 261120
        %v274 = vsel %vm272, %v245, 0
        %v277 = vsel %vm272, %v246, 0
        %v280 = vsel %vm272, %v247, 0
        %v283 = vsel %vm272, %v248, 0
        %v286 = vsel %vm272, %v249, 0
        %v289 = vsel %vm272, %v250, 0
        %v292 = vsel %vm272, %v251, 0
        %v295 = vsel %vm272, %v252, 0
        %v298 = vsel %vm272, %v253, 0
        %v301 = vsel %vm272, %v254, 0
        %v304 = vsel %vm272, %v255, 0
        %v307 = vsel %vm272, %v256, 0
        %v310 = vsel %vm272, %v257, 0
        %v313 = vsel %vm272, %v258, 0
        %v316 = vsel %vm272, %v259, 0
        %v319 = vsel %vm272, %v260, 0
        %321 = vmatprep.subr.mxu0 0.0
        %322 = vmatpush1.msra.mxu0 0.0
        %323 = vmatprep.subr.mxu0 0.0
        %324 = vmatpush1.msra.mxu0 0.0
        %325 = vmatprep.subr.mxu0 0.0
        %326 = vmatpush1.msra.mxu0 0.0
        %327 = vmatprep.subr.mxu0 0.0
        %328 = vmatpush1.msra.mxu0 0.0
        %329 = vmatprep.subr.mxu0 0.0
        %330 = vmatpush1.msra.mxu0 0.0
        %331 = vmatprep.subr.mxu0 0.0
        %332 = vmatpush1.msra.mxu0 0.0
        %333 = vmatprep.subr.mxu0 0.0
        %334 = vmatpush1.msra.mxu0 0.0
        %335 = vmatprep.subr.mxu0 0.0
        %336 = vmatpush1.msra.mxu0 0.0
        %337 = vmatprep.subr.mxu0 0.0
        %338 = vmatpush1.msra.mxu0 0.0
        %339 = vmatprep.subr.mxu0 0.0
        %340 = vmatpush1.msra.mxu0 0.0
        %341 = vmatprep.subr.mxu0 0.0
        %342 = vmatpush1.msra.mxu0 0.0
        %343 = vmatprep.subr.mxu0 0.0
        %344 = vmatpush1.msra.mxu0 0.0
        %345 = vmatprep.subr.mxu0 0.0
        %346 = vmatpush1.msra.mxu0 %v264
        %347 = vmatprep.subr.mxu0 0.0
        %348 = vmatpush1.msra.mxu0 %v263
        %349 = vmatprep.subr.mxu0 0.0
        %350 = vmatpush1.msra.mxu0 %v262
        %351 = vmatprep.subr.mxu0 0.0
        %352 = vmatpush1.msra.mxu0 %v261
        %353 = vmatprep.subr.mxu0 0.0
        %354 = vmatpush2.msra.mxu0 0.0
        %355 = vmatprep.subr.mxu0 0.0
        %356 = vmatpush2.msra.mxu0 0.0
        %357 = vmatprep.subr.mxu0 0.0
        %358 = vmatpush2.msra.mxu0 0.0
        %359 = vmatprep.subr.mxu0 0.0
        %360 = vmatpush2.msra.mxu0 0.0
        %361 = vmatprep.subr.mxu0 0.0
        %362 = vmatpush2.msra.mxu0 0.0
        %363 = vmatprep.subr.mxu0 0.0
        %364 = vmatpush2.msra.mxu0 0.0
        %365 = vmatprep.subr.mxu0 0.0
        %366 = vmatpush2.msra.mxu0 0.0
        %367 = vmatprep.subr.mxu0 0.0
        %368 = vmatpush2.msra.mxu0 0.0
        %369 = vmatprep.subr.mxu0 0.0
        %370 = vmatpush2.msra.mxu0 0.0
        %371 = vmatprep.subr.mxu0 0.0
        %372 = vmatpush2.msra.mxu0 0.0
        %373 = vmatprep.subr.mxu0 0.0
        %374 = vmatpush2.msra.mxu0 0.0
        %375 = vmatprep.subr.mxu0 0.0
        %376 = vmatpush2.msra.mxu0 0.0
        %377 = vmatprep.subr.mxu0 0.0
        %378 = vmatpush2.msra.mxu0 0.0
        %379 = vmatprep.subr.mxu0 0.0
        %380 = vmatpush2.msra.mxu0 0.0
        %381 = vmatprep.subr.mxu0 0.0
        %382 = vmatpush2.msra.mxu0 0.0
        %383 = vmatprep.subr.mxu0 0.0
        %384 = vmatpush2.msra.mxu0 0.0
        %385 = vmatprep.mubr.f32.mxu0 0.0
        %386 = vmatmul.mubr.f32.gmra.mxu0 %v274
        %v387 = vpop.f32.mrf.mxu0
        %v388 = vadd.f32 %v270, %v387
        %v389 = vpop.f32.mrf.mxu0
        %390 = vmatprep.mubr.f32.mxu0 0.0
        %391 = vmatmul.mubr.f32.gmra.mxu0 %v277
        %v392 = vpop.f32.mrf.mxu0
        %v393 = vadd.f32 %v270, %v392
        %v394 = vpop.f32.mrf.mxu0
        %395 = vmatprep.mubr.f32.mxu0 0.0
        %396 = vmatmul.mubr.f32.gmra.mxu0 %v280
        %v397 = vpop.f32.mrf.mxu0
        %v398 = vadd.f32 %v270, %v397
        %v399 = vpop.f32.mrf.mxu0
        %400 = vmatprep.mubr.f32.mxu0 0.0
        %401 = vmatmul.mubr.f32.gmra.mxu0 %v283
        %v402 = vpop.f32.mrf.mxu0
        %v403 = vadd.f32 %v270, %v402
        %v404 = vpop.f32.mrf.mxu0
        %405 = vmatprep.mubr.f32.mxu0 0.0
        %406 = vmatmul.mubr.f32.gmra.mxu0 %v286
        %v407 = vpop.f32.mrf.mxu0
        %v408 = vadd.f32 %v270, %v407
        %v409 = vpop.f32.mrf.mxu0
        %410 = vmatprep.mubr.f32.mxu0 0.0
        %411 = vmatmul.mubr.f32.gmra.mxu0 %v289
        %v412 = vpop.f32.mrf.mxu0
        %v413 = vadd.f32 %v270, %v412
        %v414 = vpop.f32.mrf.mxu0
        %415 = vmatprep.mubr.f32.mxu0 0.0
        %416 = vmatmul.mubr.f32.gmra.mxu0 %v292
        %v417 = vpop.f32.mrf.mxu0
        %v418 = vadd.f32 %v270, %v417
        %v419 = vpop.f32.mrf.mxu0
        %420 = vmatprep.mubr.f32.mxu0 0.0
        %421 = vmatmul.mubr.f32.gmra.mxu0 %v295
        %v422 = vpop.f32.mrf.mxu0
        %v423 = vadd.f32 %v270, %v422
        %v424 = vpop.f32.mrf.mxu0
        %425 = vmatprep.mubr.f32.mxu0 0.0
        %426 = vmatmul.mubr.f32.gmra.mxu0 %v298
        %v427 = vpop.f32.mrf.mxu0
        %v428 = vadd.f32 %v270, %v427
        %v429 = vpop.f32.mrf.mxu0
        %430 = vmatprep.mubr.f32.mxu0 0.0
        %431 = vmatmul.mubr.f32.gmra.mxu0 %v301
        %v432 = vpop.f32.mrf.mxu0
        %v433 = vadd.f32 %v270, %v432
        %v434 = vpop.f32.mrf.mxu0
        %435 = vmatprep.mubr.f32.mxu0 0.0
        %436 = vmatmul.mubr.f32.gmra.mxu0 %v304
        %v437 = vpop.f32.mrf.mxu0
        %v438 = vadd.f32 %v270, %v437
        %v439 = vpop.f32.mrf.mxu0
        %440 = vmatprep.mubr.f32.mxu0 0.0
        %441 = vmatmul.mubr.f32.gmra.mxu0 %v307
        %v442 = vpop.f32.mrf.mxu0
        %v443 = vadd.f32 %v270, %v442
        %v444 = vpop.f32.mrf.mxu0
        %445 = vmatprep.mubr.f32.mxu0 0.0
        %446 = vmatmul.mubr.f32.gmra.mxu0 %v310
        %v447 = vpop.f32.mrf.mxu0
        %v448 = vadd.f32 %v270, %v447
        %v449 = vpop.f32.mrf.mxu0
        %450 = vmatprep.mubr.f32.mxu0 0.0
        %451 = vmatmul.mubr.f32.gmra.mxu0 %v313
        %v452 = vpop.f32.mrf.mxu0
        %v453 = vadd.f32 %v270, %v452
        %v454 = vpop.f32.mrf.mxu0
        %455 = vmatprep.mubr.f32.mxu0 0.0
        %456 = vmatmul.mubr.f32.gmra.mxu0 %v316
        %v457 = vpop.f32.mrf.mxu0
        %v458 = vadd.f32 %v270, %v457
        %v459 = vpop.f32.mrf.mxu0
        %460 = vmatprep.mubr.f32.mxu0 0.0
        %461 = vmatmul.mubr.f32.gmra.mxu0 %v319
        %v462 = vpop.f32.mrf.mxu0
        %v463 = vadd.f32 %v270, %v462
        %v464 = vpop.f32.mrf.mxu0
        %465 = vdwg.mxu0
        %v466 = vmax.f32 %v388, 0.0
        %v467 = vmax.f32 %v393, 0.0
        %v468 = vmax.f32 %v398, 0.0
        %v469 = vmax.f32 %v403, 0.0
        %v470 = vmax.f32 %v408, 0.0
        %v471 = vmax.f32 %v413, 0.0
        %v472 = vmax.f32 %v418, 0.0
        %v473 = vmax.f32 %v423, 0.0
        %v474 = vmax.f32 %v428, 0.0
        %v475 = vmax.f32 %v433, 0.0
        %v476 = vmax.f32 %v438, 0.0
        %v477 = vmax.f32 %v443, 0.0
        %v478 = vmax.f32 %v448, 0.0
        %v479 = vmax.f32 %v453, 0.0
        %v480 = vmax.f32 %v458, 0.0
        %v481 = vmax.f32 %v463, 0.0
        %v482 = vld [vmem:[%s3] sm:$0x1]
        %s483 = sld [smem:[#allocation2]]
        %v484 = vstv %s483
        %vm485 = vcmask 130048
        %v487 = vsel %vm485, %v482, 0
        %v490 = vsel %vm485, %v466, 0
        %v493 = vsel %vm485, %v467, 0
        %v496 = vsel %vm485, %v468, 0
        %v499 = vsel %vm485, %v469, 0
        %v502 = vsel %vm485, %v470, 0
        %v505 = vsel %vm485, %v471, 0
        %v508 = vsel %vm485, %v472, 0
        %v511 = vsel %vm485, %v473, 0
        %v514 = vsel %vm485, %v474, 0
        %v517 = vsel %vm485, %v475, 0
        %v520 = vsel %vm485, %v476, 0
        %v523 = vsel %vm485, %v477, 0
        %v526 = vsel %vm485, %v478, 0
        %v529 = vsel %vm485, %v479, 0
        %v532 = vsel %vm485, %v480, 0
        %v535 = vsel %vm485, %v481, 0
        %537 = vmatprep.subr.mxu0 0.0
        %538 = vmatpush1.xpose.msra.mxu0 %v535
        %539 = vmatprep.subr.mxu0 0.0
        %540 = vmatpush1.xpose.msra.mxu0 %v532
        %541 = vmatprep.subr.mxu0 0.0
        %542 = vmatpush1.xpose.msra.mxu0 %v529
        %543 = vmatprep.subr.mxu0 0.0
        %544 = vmatpush1.xpose.msra.mxu0 %v526
        %545 = vmatprep.subr.mxu0 0.0
        %546 = vmatpush1.xpose.msra.mxu0 %v523
        %547 = vmatprep.subr.mxu0 0.0
        %548 = vmatpush1.xpose.msra.mxu0 %v520
        %549 = vmatprep.subr.mxu0 0.0
        %550 = vmatpush1.xpose.msra.mxu0 %v517
        %551 = vmatprep.subr.mxu0 0.0
        %552 = vmatpush1.xpose.msra.mxu0 %v514
        %553 = vmatprep.subr.mxu0 0.0
        %554 = vmatpush1.xpose.msra.mxu0 %v511
        %555 = vmatprep.subr.mxu0 0.0
        %556 = vmatpush1.xpose.msra.mxu0 %v508
        %557 = vmatprep.subr.mxu0 0.0
        %558 = vmatpush1.xpose.msra.mxu0 %v505
        %559 = vmatprep.subr.mxu0 0.0
        %560 = vmatpush1.xpose.msra.mxu0 %v502
        %561 = vmatprep.subr.mxu0 0.0
        %562 = vmatpush1.xpose.msra.mxu0 %v499
        %563 = vmatprep.subr.mxu0 0.0
        %564 = vmatpush1.xpose.msra.mxu0 %v496
        %565 = vmatprep.subr.mxu0 0.0
        %566 = vmatpush1.xpose.msra.mxu0 %v493
        %567 = vmatprep.subr.mxu0 0.0
        %568 = vmatpush1.xpose.msra.mxu0 %v490
        %569 = vmatprep.subr.mxu0 0.0
        %570 = vmatpush2.xpose.msra.mxu0 0.0
        %571 = vmatprep.subr.mxu0 0.0
        %572 = vmatpush2.xpose.msra.mxu0 0.0
        %573 = vmatprep.subr.mxu0 0.0
        %574 = vmatpush2.xpose.msra.mxu0 0.0
        %575 = vmatprep.subr.mxu0 0.0
        %576 = vmatpush2.xpose.msra.mxu0 0.0
        %577 = vmatprep.subr.mxu0 0.0
        %578 = vmatpush2.xpose.msra.mxu0 0.0
        %579 = vmatprep.subr.mxu0 0.0
        %580 = vmatpush2.xpose.msra.mxu0 0.0
        %581 = vmatprep.subr.mxu0 0.0
        %582 = vmatpush2.xpose.msra.mxu0 0.0
        %583 = vmatprep.subr.mxu0 0.0
        %584 = vmatpush2.xpose.msra.mxu0 0.0
        %585 = vmatprep.subr.mxu0 0.0
        %586 = vmatpush2.xpose.msra.mxu0 0.0
        %587 = vmatprep.subr.mxu0 0.0
        %588 = vmatpush2.xpose.msra.mxu0 0.0
        %589 = vmatprep.subr.mxu0 0.0
        %590 = vmatpush2.xpose.msra.mxu0 0.0
        %591 = vmatprep.subr.mxu0 0.0
        %592 = vmatpush2.xpose.msra.mxu0 0.0
        %593 = vmatprep.subr.mxu0 0.0
        %594 = vmatpush2.xpose.msra.mxu0 0.0
        %595 = vmatprep.subr.mxu0 0.0
        %596 = vmatpush2.xpose.msra.mxu0 0.0
        %597 = vmatprep.subr.mxu0 0.0
        %598 = vmatpush2.xpose.msra.mxu0 0.0
        %599 = vmatprep.subr.mxu0 0.0
        %600 = vmatpush2.xpose.msra.mxu0 0.0
        %601 = vmatprep.mubr.f32.mxu0 0.0
        %602 = vmatmul.mubr.f32.gmra.mxu0 %v487
        %v603 = vpop.f32.mrf.mxu0
        %v604 = vadd.f32 %v484, %v603
        %v605 = vpop.f32.mrf.mxu0
        %606 = vdwg.mxu0
        %v607 = vxor.u32 %v604, 2147483648
        %v608 = vmul.f32 %v607, 1.442695
        %v609 = vpow.pop %v608
        %v610 = vadd.f32 %v609, 1.0
        %v611 = vrcp.pop %v610
        %v612 = vmul.f32 1.0, %v611
        %613 = vst [vmem:[%s230] sm:$0x1] %v612
        %s614 = sand.u32 %s138, 1
        %s615 = scalar_lea.sflag [#allocation4], %s614
        %s616 = sand.u32 %s138, 1
        %s617 = scalar_lea.vmem [#allocation3], %s616
        // Predicated region
        $region41: #{tpu_custom_call.1} parent=39 // pred_check
          %p618 = pneg %p148
        $region42: #{tpu_custom_call.1} parent=39 // pred_check_branch
          %620 = sbr.rel (%p618) target = $region44
        $region43: #{tpu_custom_call.1} parent=39 // pred_region
          %s622 = ssub.s32 16, 16
          %623 = vsyncadd %s615, %s622
          %s624 = smul.addr %s20, 16
          %s625 = scalar_lea.hbm %s5, %s624
          %s627 = sshll.u32 %s617, 4
          %s628 = int_to_ptr.vmem [resolvable:$true] %s627
          %630 = dma.vmem_to_hbm [thread:$0]  %s628, 16, %s625, %s615
        $region44: #{tpu_custom_call.1} parent=39 // pred_fallthru
          _
      $region40: #{tpu_custom_call.1} parent=5 // pred_fallthru
        _
      %p631 = scmp.le.s32.totalorder 2, %s15
      // Predicated region
      $region45: #{tpu_custom_call.1} parent=5 // pred_check
        %p632 = pneg %p631
      $region46: #{tpu_custom_call.1} parent=5 // pred_check_branch
        %634 = sbr.rel (%p632) target = $region48
      $region47: #{tpu_custom_call.1} parent=5 // pred_region
        %s635 = ssub.s32 %s15, 2
        // Predicated region
        $region49: #{tpu_custom_call.1} parent=47 // pred_check
          %p636 = pneg %p154
        $region50: #{tpu_custom_call.1} parent=47 // pred_check_branch
          %638 = sbr.rel (%p636) target = $region52
        $region51: #{tpu_custom_call.1} parent=47 // pred_region
          %s639 = sand.u32 %s139, 1
          %s640 = scalar_lea.sflag [#allocation4], %s639
          %s641 = sand.u32 %s139, 1
          %s642 = scalar_lea.vmem [#allocation3], %s641
          %643 = dma.done %s640, 16
        $region52: #{tpu_custom_call.1} parent=47 // pred_fallthru
          _
      $region48: #{tpu_custom_call.1} parent=5 // pred_fallthru
        _
    $region6: #{tpu_custom_call.1} parent=1 // loop_footer
      %s19 = sadd.s32 1, %s15
    $region7: #{tpu_custom_call.1} parent=1 // loop_footer_branch
      %14 = sbr.rel target = $region3
    $region8: #{tpu_custom_call.1} parent=1 // loop_exit
      _
    %644 = vsyncpa [#allocation4], 1
    %s645 = scalar_lea.sflag [#allocation4], 1
    %646 = vsyncpa %s645, 1

</llo_original>
